<compile_context>
chip_gen: v7x
topology: tpu7x:2x2x1
jax: 0.10.0
libtpu: 0.0.40
codegen_flags: <defaults>
</compile_context>

<pallas_src>
import jax
import jax.numpy as jnp
from jax.experimental import pallas as pl
from jax.experimental.pallas import tpu as pltpu


def combination_to_id(shifting_type, transformer_ID, combinations):
    cid = 0
    for st in combinations:
        for tid in combinations[st]:
            if st == shifting_type and tid == transformer_ID:
                return cid
            cid += 1
    raise KeyError((shifting_type, transformer_ID))


def _round_up(n, m):
    return ((n + m - 1) // m) * m


def _ae_separate_kernel(ids_ref, x_ref, w1_ref, b1_ref, w2_ref, b2_ref, o_ref):
    """One lane-dense row tile (rows on the 128-lane axis), written exactly once.

    x_ref : (S, TN)   bf16   features, transposed (rows on lanes)
    ids_ref: (1, TN)  int32  combination ID per row (-1 for padded rows)
    w1_ref: (C*E, S)  bf16   stacked W1[c]^T
    b1_ref: (C*E, 1)  f32    stacked b1[c]
    w2_ref: (S, C*E)  bf16   stacked W2[c]^T (column groups of width E)
    b2_ref: (S, C)    f32    b2 per combination
    o_ref : (S, TN)   out
    """
    x_t = x_ref[...]                         # (S, TN) bf16
    ids = ids_ref[...]                       # (1, TN) int32
    CE = w1_ref.shape[0]
    C = b2_ref.shape[1]
    E = CE // C
    TN = x_t.shape[1]

    # Layer 1 for ALL combinations at once: (CE, S) @ (S, TN) -> (CE, TN) f32.
    h = jnp.dot(w1_ref[...], x_t, preferred_element_type=jnp.float32) + b1_ref[...]
    h = jnp.maximum(h, 0.0)

    # Keep only the E-row group matching each column's combination ID.
    # (Padded / out-of-range IDs match no group -> output 0 for those columns.)
    row = jax.lax.broadcasted_iota(jnp.int32, (CE, TN), 0)
    lo = ids * E                                               # (1, TN)
    h = jnp.where((row >= lo) & (row < lo + E), h, 0.0)        # (CE, TN)

    # Layer 2: (S, CE) @ (CE, TN) -> (S, TN); only the selected group contributes.
    y = jnp.dot(w2_ref[...], h.astype(jnp.bfloat16),
                preferred_element_type=jnp.float32)

    # Per-column second bias via a tiny one-hot matmul: (S, C) @ (C, TN).
    combo = jax.lax.broadcasted_iota(jnp.int32, (C, TN), 0)
    onehot = (combo == ids).astype(jnp.float32)
    y = y + jnp.dot(b2_ref[...], onehot, preferred_element_type=jnp.float32)

    o_ref[...] = y.astype(o_ref.dtype)       # single full-width lane-dense store


def vanilla_ae_separate_forward(x, params, sequence_length, *,
                                max_row_tile=16384, out_dtype=jnp.float32):
    """x: [N, sequence_length + 1] f32 (last column = combination ID)."""
    W1, b1, W2, b2 = params                  # (C,S,E),(C,1,E),(C,E,S),(C,1,S)
    C, S, E = W1.shape
    assert S == sequence_length
    N = x.shape[0]
    CE = C * E

    ids = jnp.round(x[:, S]).astype(jnp.int32)      # round before int cast

    # Row-tile size: as large as affordable (amortize per-step overhead), but
    # keep >= 2 tiles when the batch spans more than one lane tile so the
    # "parallel" grid axis can shard across both v7x TensorCores.
    n128 = _round_up(max(N, 1), 128)
    TN = min(max_row_tile, n128)
    if TN == n128 and n128 >= 256:
        TN = _round_up(n128 // 2, 128)
    N_pad = _round_up(n128, TN)
    num_tiles = N_pad // TN

    # Lane-dense transposed layout: rows on the 128-lane axis, bf16 features.
    xT = jnp.zeros((S, N_pad), jnp.bfloat16).at[:, :N].set(
        x[:, :S].astype(jnp.bfloat16).T)
    idsT = jnp.full((1, N_pad), -1, jnp.int32).at[0, :N].set(ids)

    # Concatenated (transposed) weight stacks — tiny, fully VMEM-resident.
    W1cat = jnp.swapaxes(W1, 1, 2).reshape(CE, S).astype(jnp.bfloat16)   # (CE, S)
    b1cat = jnp.swapaxes(b1, 1, 2).reshape(CE, 1).astype(jnp.float32)    # (CE, 1)
    W2cat = jnp.transpose(W2, (2, 0, 1)).reshape(S, CE).astype(jnp.bfloat16)  # (S, CE)
    b2stk = b2[:, 0, :].T.astype(jnp.float32)                            # (S, C)

    out_itemsize = jnp.dtype(out_dtype).itemsize
    cost = pl.CostEstimate(
        flops=int(2 * N_pad * (2 * CE * S + C * S)),      # exactly-once compute
        transcendentals=0,
        bytes_accessed=int(xT.size * 2 + idsT.size * 4 + S * N_pad * out_itemsize +
                           W1cat.size * 2 + W2cat.size * 2 +
                           b1cat.size * 4 + b2stk.size * 4),
    )

    outT = pl.pallas_call(
        _ae_separate_kernel,
        out_shape=jax.ShapeDtypeStruct((S, N_pad), out_dtype),
        grid=(num_tiles,),
        in_specs=[
            pl.BlockSpec((1, TN), lambda t: (0, t)),       # ids^T
            pl.BlockSpec((S, TN), lambda t: (0, t)),       # x^T
            pl.BlockSpec((CE, S), lambda t: (0, 0)),       # W1 stack (constant)
            pl.BlockSpec((CE, 1), lambda t: (0, 0)),       # b1 stack (constant)
            pl.BlockSpec((S, CE), lambda t: (0, 0)),       # W2 stack (constant)
            pl.BlockSpec((S, C), lambda t: (0, 0)),        # b2 stack (constant)
        ],
        out_specs=pl.BlockSpec((S, TN), lambda t: (0, t)),
        compiler_params=pltpu.CompilerParams(
            dimension_semantics=("parallel",),             # independent row tiles
            vmem_limit_bytes=32 * 1024 * 1024,
        ),
        cost_estimate=cost,
    )(idsT, xT, W1cat, b1cat, W2cat, b2stk)

    return outT[:, :N].T                    # (N, S), original row order


def init_params(key, combinations, sequence_length, encoding_size):
    """Per-combination Linear(S,E) / Linear(E,S) weights, PyTorch-style uniform init."""
    num_combos = sum(len(v) for v in combinations.values())
    keys = jax.random.split(key, 4)
    lim1 = 1.0 / jnp.sqrt(sequence_length)
    lim2 = 1.0 / jnp.sqrt(encoding_size)
    W1 = jax.random.uniform(keys[0], (num_combos, sequence_length, encoding_size),
                            jnp.float32, -lim1, lim1)
    b1 = jax.random.uniform(keys[1], (num_combos, 1, encoding_size),
                            jnp.float32, -lim1, lim1)
    W2 = jax.random.uniform(keys[2], (num_combos, encoding_size, sequence_length),
                            jnp.float32, -lim2, lim2)
    b2 = jax.random.uniform(keys[3], (num_combos, 1, sequence_length),
                            jnp.float32, -lim2, lim2)
    return W1, b1, W2, b2


def reference_forward_f32(x, params, sequence_length):
    """Pure-JAX reference in full f32 (original module semantics)."""
    W1, b1, W2, b2 = params
    S = sequence_length
    feats = x[:, :S].astype(jnp.float32)
    ids = jnp.round(x[:, S]).astype(jnp.int32)
    h = jnp.maximum(jnp.einsum('ns,nse->ne', feats, W1[ids],
                               precision='highest') + b1[ids, 0], 0.0)
    y = jnp.einsum('ne,nes->ns', h, W2[ids], precision='highest') + b2[ids, 0]
    return y


def reference_forward_bf16(x, params, sequence_length):
    """Reference mimicking the kernel's bf16-input / f32-accumulate numerics."""
    W1, b1, W2, b2 = params
    S = sequence_length
    bf = lambda a: a.astype(jnp.bfloat16).astype(jnp.float32)
    feats = bf(x[:, :S])
    ids = jnp.round(x[:, S]).astype(jnp.int32)
    h = jnp.maximum(jnp.einsum('ns,nse->ne', feats, bf(W1)[ids],
                               precision='highest') + b1[ids, 0], 0.0)
    h = bf(h)
    y = jnp.einsum('ne,nes->ns', h, bf(W2)[ids], precision='highest') + b2[ids, 0]
    return y


if __name__ == "__main__":
    # Module hyper-parameters (n_hidden_layers == 0 branch).
    encoding_size = 8
    sequence_length = 16
    combinations = {"shift": [0, 1], "scale": [0, 1]}   # -> 4 combination IDs (0..3)
    num_combos = sum(len(v) for v in combinations.values())
    assert combination_to_id("scale", 1, combinations) == num_combos - 1

    N = 8  # batch of rows

    key = jax.random.PRNGKey(0)
    k_feat, k_id, k_par = jax.random.split(key, 3)

    feats = jax.random.normal(k_feat, (N, sequence_length), jnp.float32)
    ids = jax.random.randint(k_id, (N,), 0, num_combos).astype(jnp.float32)
    x = jnp.concatenate([feats, ids[:, None]], axis=1)   # [N, sequence_length + 1]

    params = init_params(k_par, combinations, sequence_length, encoding_size)

    out = vanilla_ae_separate_forward(x, params, sequence_length)
    out = jax.block_until_ready(out)

    ref_bf16 = reference_forward_bf16(x, params, sequence_length)
    ref_f32 = reference_forward_f32(x, params, sequence_length)
    assert out.shape == (N, sequence_length)
    assert jnp.allclose(out, ref_bf16, atol=5e-3, rtol=5e-3), "mismatch vs bf16 reference"
    assert jnp.allclose(out, ref_f32, atol=1e-1, rtol=1e-1), "mismatch vs f32 reference"

    print("KERNEL_OK")
</pallas_src>

<mosaic_0001>
module attributes {stable_mosaic.version = 11 : i64} {
  func.func @_ae_separate_kernel(%arg0: i32, %arg1: memref<1x128xi32, #tpu.memory_space<vmem>>, %arg2: memref<16x128xbf16, #tpu.memory_space<vmem>>, %arg3: memref<32x16xbf16, #tpu.memory_space<vmem>>, %arg4: memref<32x1xf32, #tpu.memory_space<vmem>>, %arg5: memref<16x32xbf16, #tpu.memory_space<vmem>>, %arg6: memref<16x4xf32, #tpu.memory_space<vmem>>, %arg7: memref<16x128xf32, #tpu.memory_space<vmem>>) attributes {dimension_semantics = [#tpu.dimension_semantics<parallel>], iteration_bounds = array<i64: 1>, scalar_prefetch = 0 : i64, scratch_operands = 0 : i64, tpu.core_type = #tpu.core_type<tc>, window_params = [{transform_indices = @transform_0, window_bounds = array<i64: 1, 128>}, {transform_indices = @transform_1, window_bounds = array<i64: 16, 128>}, {pipeline_mode = #tpu.pipeline_mode<synchronous>, transform_indices = @transform_2, window_bounds = array<i64: 32, 16>}, {pipeline_mode = #tpu.pipeline_mode<synchronous>, transform_indices = @transform_3, window_bounds = array<i64: 32, 1>}, {pipeline_mode = #tpu.pipeline_mode<synchronous>, transform_indices = @transform_4, window_bounds = array<i64: 16, 32>}, {pipeline_mode = #tpu.pipeline_mode<synchronous>, transform_indices = @transform_5, window_bounds = array<i64: 16, 4>}, {transform_indices = @transform_6, window_bounds = array<i64: 16, 128>}]} {
    %c0 = arith.constant 0 : index
    %c0_0 = arith.constant 0 : index
    %0 = vector.load %arg2[%c0, %c0_0] : memref<16x128xbf16, #tpu.memory_space<vmem>>, vector<16x128xbf16>
    %c0_1 = arith.constant 0 : index
    %c0_2 = arith.constant 0 : index
    %1 = vector.load %arg1[%c0_1, %c0_2] : memref<1x128xi32, #tpu.memory_space<vmem>>, vector<1x128xi32>
    %c0_3 = arith.constant 0 : index
    %c0_4 = arith.constant 0 : index
    %2 = vector.load %arg3[%c0_3, %c0_4] : memref<32x16xbf16, #tpu.memory_space<vmem>>, vector<32x16xbf16>
    %cst = arith.constant dense<0.000000e+00> : vector<32x128xf32>
    %3 = tpu.matmul %2, %0, %cst {dimension_numbers = #tpu.dot_dimension_numbers<[1], [0], [0], [1], [0, 0, 1, 1], [], []>} : vector<32x16xbf16>, vector<16x128xbf16>, vector<32x128xf32> -> vector<32x128xf32>
    %c0_5 = arith.constant 0 : index
    %c0_6 = arith.constant 0 : index
    %4 = vector.load %arg4[%c0_5, %c0_6] : memref<32x1xf32, #tpu.memory_space<vmem>>, vector<32x1xf32>
    %5 = vector.broadcast %4 : vector<32x1xf32> to vector<32x128xf32>
    %6 = arith.addf %3, %5 : vector<32x128xf32>
    %cst_7 = arith.constant 0.000000e+00 : f32
    %7 = vector.broadcast %cst_7 : f32 to vector<32x128xf32>
    %8 = arith.maximumf %6, %7 : vector<32x128xf32>
    %9 = tpu.iota {dimensions = array<i32: 0>} : vector<32x128xi32>
    %c8_i32 = arith.constant 8 : i32
    %10 = vector.broadcast %c8_i32 : i32 to vector<1x128xi32>
    %11 = arith.muli %1, %10 : vector<1x128xi32>
    %12 = vector.broadcast %11 : vector<1x128xi32> to vector<32x128xi32>
    %13 = arith.cmpi sge, %9, %12 : vector<32x128xi32>
    %c8_i32_8 = arith.constant 8 : i32
    %14 = vector.broadcast %c8_i32_8 : i32 to vector<1x128xi32>
    %15 = arith.addi %11, %14 : vector<1x128xi32>
    %16 = vector.broadcast %15 : vector<1x128xi32> to vector<32x128xi32>
    %17 = arith.cmpi slt, %9, %16 : vector<32x128xi32>
    %18 = arith.andi %13, %17 : vector<32x128xi1>
    %cst_9 = arith.constant 0.000000e+00 : f32
    %19 = vector.broadcast %cst_9 : f32 to vector<32x128xf32>
    %20 = arith.select %18, %8, %19 : vector<32x128xi1>, vector<32x128xf32>
    %c0_10 = arith.constant 0 : index
    %c0_11 = arith.constant 0 : index
    %21 = vector.load %arg5[%c0_10, %c0_11] : memref<16x32xbf16, #tpu.memory_space<vmem>>, vector<16x32xbf16>
    %22 = arith.truncf %20 : vector<32x128xf32> to vector<32x128xbf16>
    %cst_12 = arith.constant dense<0.000000e+00> : vector<16x128xf32>
    %23 = tpu.matmul %21, %22, %cst_12 {dimension_numbers = #tpu.dot_dimension_numbers<[1], [0], [0], [1], [0, 0, 1, 1], [], []>} : vector<16x32xbf16>, vector<32x128xbf16>, vector<16x128xf32> -> vector<16x128xf32>
    %24 = tpu.iota {dimensions = array<i32: 0>} : vector<4x128xi32>
    %25 = vector.broadcast %1 : vector<1x128xi32> to vector<4x128xi32>
    %26 = arith.cmpi eq, %24, %25 : vector<4x128xi32>
    %27 = arith.extui %26 : vector<4x128xi1> to vector<4x128xi32>
    %28 = arith.sitofp %27 : vector<4x128xi32> to vector<4x128xf32>
    %c0_13 = arith.constant 0 : index
    %c0_14 = arith.constant 0 : index
    %29 = vector.load %arg6[%c0_13, %c0_14] : memref<16x4xf32, #tpu.memory_space<vmem>>, vector<16x4xf32>
    %cst_15 = arith.constant dense<0.000000e+00> : vector<16x128xf32>
    %30 = tpu.matmul %29, %28, %cst_15 {dimension_numbers = #tpu.dot_dimension_numbers<[1], [0], [0], [1], [0, 0, 1, 1], [], []>} : vector<16x4xf32>, vector<4x128xf32>, vector<16x128xf32> -> vector<16x128xf32>
    %31 = arith.addf %23, %30 : vector<16x128xf32>
    %c0_16 = arith.constant 0 : index
    %c0_17 = arith.constant 0 : index
    %32 = vector.load %arg7[%c0_16, %c0_17] : memref<16x128xf32, #tpu.memory_space<vmem>>, vector<16x128xf32>
    tpu.vector_store %arg7[%c0_16, %c0_17], %31 {strides = array<i32>} : memref<16x128xf32, #tpu.memory_space<vmem>>, vector<16x128xf32>,
    return
  }
  func.func @transform_0(%arg0: i32) -> (i32, i32) {
    %c0_i32 = arith.constant 0 : i32
    %c0_i32_0 = arith.constant 0 : i32
    return %c0_i32, %arg0 : i32, i32
  }
  func.func @transform_1(%arg0: i32) -> (i32, i32) {
    %c0_i32 = arith.constant 0 : i32
    %c0_i32_0 = arith.constant 0 : i32
    return %c0_i32, %arg0 : i32, i32
  }
  func.func @transform_2(%arg0: i32) -> (i32, i32) {
    %c0_i32 = arith.constant 0 : i32
    %c0_i32_0 = arith.constant 0 : i32
    %c0_i32_1 = arith.constant 0 : i32
    return %c0_i32, %c0_i32_0 : i32, i32
  }
  func.func @transform_3(%arg0: i32) -> (i32, i32) {
    %c0_i32 = arith.constant 0 : i32
    %c0_i32_0 = arith.constant 0 : i32
    %c0_i32_1 = arith.constant 0 : i32
    return %c0_i32, %c0_i32_0 : i32, i32
  }
  func.func @transform_4(%arg0: i32) -> (i32, i32) {
    %c0_i32 = arith.constant 0 : i32
    %c0_i32_0 = arith.constant 0 : i32
    %c0_i32_1 = arith.constant 0 : i32
    return %c0_i32, %c0_i32_0 : i32, i32
  }
  func.func @transform_5(%arg0: i32) -> (i32, i32) {
    %c0_i32 = arith.constant 0 : i32
    %c0_i32_0 = arith.constant 0 : i32
    %c0_i32_1 = arith.constant 0 : i32
    return %c0_i32, %c0_i32_0 : i32, i32
  }
  func.func @transform_6(%arg0: i32) -> (i32, i32) {
    %c0_i32 = arith.constant 0 : i32
    %c0_i32_0 = arith.constant 0 : i32
    return %c0_i32, %arg0 : i32, i32
  }
}

</mosaic_0001>

<llo_original>
// kernel: tpu_custom_call.1
$region0: #{tpu_custom_call.1}
  #allocation0 [shape = 'u32[]', space=smem, size = 0x4, offset = 0x4, fixed_abs, tag = 'smem constant byte address 0x4 - core index']
  #allocation1 [shape = 'u32[144,128]{1,0:T(1,128)}', space=vmem, size = 0x12000, scoped, tag = 'internal scratch']
  %s0 = inlined_call_operand.vmem [shape: s32[1,128], index: 0, kind: input, shape index: {}]
  %s1 = inlined_call_operand.vmem [shape: bf16[16,128], index: 1, kind: input, shape index: {}]
  %s2 = inlined_call_operand.vmem [shape: bf16[32,16], index: 2, kind: input, shape index: {}]
  %s3 = inlined_call_operand.vmem [shape: f32[32,1], index: 3, kind: input, shape index: {}]
  %s4 = inlined_call_operand.vmem [shape: bf16[16,32], index: 4, kind: input, shape index: {}]
  %s5 = inlined_call_operand.vmem [shape: f32[16,4], index: 5, kind: input, shape index: {}]
  %s6 = inlined_call_operand.hbm [shape: f32[16,128], index: 6, kind: output, shape index: {}]
  %s7 = sld [smem:[#allocation0]]
  $region34: #{tpu_custom_call.1} parent=0
    _
  %s9 = ssub.s32 1, %s7
  %s10 = scalar_select 0, %s9, %s7
  $region1: #{tpu_custom_call.1} parent=0
    #allocation2 [shape = 'u8[8192]{0}', space=vmem, size = 0x2000, scoped, tag = 'output window, operand 0, single buffered']
    #allocation3 [shape = 's32[1]{0}', space=sflag, size = 0x4, scoped, tag = 'scoped memory for tpu_custom_call.1']
    %11 = vsyncpa [#allocation3], 0
    // Predicated region
    $region2: #{tpu_custom_call.1} parent=1 // pred_check
      _
    $region3: #{tpu_custom_call.1} parent=1 // pred_check_branch
      %13 = sbr.rel (0) target = $region5
    $region4: #{tpu_custom_call.1} parent=1 // pred_region
      _
    $region5: #{tpu_custom_call.1} parent=1 // pred_fallthru
      _
    // Predicated region
    $region6: #{tpu_custom_call.1} parent=1 // pred_check
      _
    $region7: #{tpu_custom_call.1} parent=1 // pred_check_branch
      %15 = sbr.rel (0) target = $region9
    $region8: #{tpu_custom_call.1} parent=1 // pred_region
      _
    $region9: #{tpu_custom_call.1} parent=1 // pred_fallthru
      _
    // Predicated region
    $region10: #{tpu_custom_call.1} parent=1 // pred_check
      _
    $region11: #{tpu_custom_call.1} parent=1 // pred_check_branch
      %17 = sbr.rel (0) target = $region13
    $region12: #{tpu_custom_call.1} parent=1 // pred_region
      _
    $region13: #{tpu_custom_call.1} parent=1 // pred_fallthru
      _
    // Predicated region
    $region14: #{tpu_custom_call.1} parent=1 // pred_check
      _
    $region15: #{tpu_custom_call.1} parent=1 // pred_check_branch
      %19 = sbr.rel (0) target = $region17
    $region16: #{tpu_custom_call.1} parent=1 // pred_region
      _
    $region17: #{tpu_custom_call.1} parent=1 // pred_fallthru
      _
    // Predicated region
    $region18: #{tpu_custom_call.1} parent=1 // pred_check
      _
    $region19: #{tpu_custom_call.1} parent=1 // pred_check_branch
      %21 = sbr.rel (0) target = $region21
    $region20: #{tpu_custom_call.1} parent=1 // pred_region
      _
    $region21: #{tpu_custom_call.1} parent=1 // pred_fallthru
      _
    // Predicated region
    $region22: #{tpu_custom_call.1} parent=1 // pred_check
      _
    $region23: #{tpu_custom_call.1} parent=1 // pred_check_branch
      %23 = sbr.rel (0) target = $region25
    $region24: #{tpu_custom_call.1} parent=1 // pred_region
      _
    $region25: #{tpu_custom_call.1} parent=1 // pred_fallthru
      _
    %v25 = vld [vmem:[%s1] sm:$0xf]
    %v26 = vld [vmem:[%s1 + $0x4] sm:$0xf]
    %v27 = vld [vmem:[%s0] sm:$0x1]
    %v28 = vld [vmem:[%s2] sm:$0xf]
    %v29 = vld [vmem:[%s2 + $0x4] sm:$0xf]
    %v30 = vld [vmem:[%s2 + $0x8] sm:$0xf]
    %v31 = vld [vmem:[%s2 + $0xc] sm:$0xf]
    %v32 = vld [vmem:[%s3] sm:$0xff]
    %v33 = vld [vmem:[%s3 + $0x8] sm:$0xff]
    %v34 = vld [vmem:[%s3 + $0x10] sm:$0xff]
    %v35 = vld [vmem:[%s3 + $0x18] sm:$0xff]
    %37 = vset.pattern.permute.xlu0 0
    %38 = vperm.xlu0 %37, %v32
    %v39 = vpop.permute.xlu0 %38
    %42 = vset.pattern.permute.xlu0 0
    %43 = vperm.xlu0 %42, %v33
    %v44 = vpop.permute.xlu0 %43
    %47 = vset.pattern.permute.xlu0 0
    %48 = vperm.xlu0 %47, %v34
    %v49 = vpop.permute.xlu0 %48
    %52 = vset.pattern.permute.xlu0 0
    %53 = vperm.xlu0 %52, %v35
    %v54 = vpop.permute.xlu0 %53
    %v60 = vunpack.c.l.b16 %v28
    %v61 = vunpack.c.l.b16 %v29
    %v62 = vunpack.c.l.b16 %v30
    %v63 = vunpack.c.l.b16 %v31
    %v64 = vpack.c.b16 %v61, %v60
    %v65 = vpack.c.b16 %v63, %v62
    %v68 = vunpack.c.l.b16 %v25
    %v69 = vunpack.c.l.b16 %v26
    %v70 = vpack.c.b16 %v69, %v68
    %vm72 = vcmask 130048
    %v74 = vsel %vm72, %v64, 0
    %v77 = vsel %vm72, %v65, 0
    %79 = vmatprep.subr.bf16.mxu0 0
    %80 = vmatpush1.bf16.msra.mxu0 %v70
    %81 = vmatprep.subr.bf16.mxu0 0
    %82 = vmatpush1.bf16.msra.mxu0 0
    %83 = vmatprep.subr.bf16.mxu0 0
    %84 = vmatpush1.bf16.msra.mxu0 0
    %85 = vmatprep.subr.bf16.mxu0 0
    %86 = vmatpush1.bf16.msra.mxu0 0
    %87 = vmatprep.subr.bf16.mxu0 0
    %88 = vmatpush1.bf16.msra.mxu0 0
    %89 = vmatprep.subr.bf16.mxu0 0
    %90 = vmatpush1.bf16.msra.mxu0 0
    %91 = vmatprep.subr.bf16.mxu0 0
    %92 = vmatpush1.bf16.msra.mxu0 0
    %93 = vmatprep.subr.bf16.mxu0 0
    %94 = vmatpush1.bf16.msra.mxu0 0
    %95 = vmatprep.subr.bf16.mxu0 0
    %96 = vmatpush1.bf16.msra.mxu0 0
    %97 = vmatprep.subr.bf16.mxu0 0
    %98 = vmatpush1.bf16.msra.mxu0 0
    %99 = vmatprep.subr.bf16.mxu0 0
    %100 = vmatpush1.bf16.msra.mxu0 0
    %101 = vmatprep.subr.bf16.mxu0 0
    %102 = vmatpush1.bf16.msra.mxu0 0
    %103 = vmatprep.subr.bf16.mxu0 0
    %104 = vmatpush1.bf16.msra.mxu0 0
    %105 = vmatprep.subr.bf16.mxu0 0
    %106 = vmatpush1.bf16.msra.mxu0 0
    %107 = vmatprep.subr.bf16.mxu0 0
    %108 = vmatpush1.bf16.msra.mxu0 0
    %109 = vmatprep.subr.bf16.mxu0 0
    %110 = vmatpush1.bf16.msra.mxu0 0
    %111 = vmatprep.mubr.bf16.mxu0 0
    %112 = vmatmul.mubr.bf16.gmra.mrb[0].mxu0 %v74
    %v113 = vpop.f32.mrb[0].mxu0
    %v114 = vadd.f32 %v39, %v113
    %v115 = vpop.f32.mrb[0].mxu0
    %v116 = vpop.f32.mrb[0].mxu0
    %v117 = vadd.f32 %v44, %v116
    %v118 = vpop.f32.mrb[0].mxu0
    %119 = vmatprep.mubr.bf16.mxu0 0
    %120 = vmatmul.mubr.bf16.gmra.mrb[0].mxu0 %v77
    %v121 = vpop.f32.mrb[0].mxu0
    %v122 = vadd.f32 %v49, %v121
    %v123 = vpop.f32.mrb[0].mxu0
    %v124 = vpop.f32.mrb[0].mxu0
    %v125 = vadd.f32 %v54, %v124
    %v126 = vpop.f32.mrb[0].mxu0
    %127 = vdwg.mxu0
    %v128 = vmax.f32 %v114, 0.0
    %v129 = vmax.f32 %v117, 0.0
    %v130 = vmax.f32 %v122, 0.0
    %v131 = vmax.f32 %v125, 0.0
    %v132 = vlaneseq
    %v133 = vshrl.u32 %v132, 7
    %v134 = vadd.s32 %v133, 8
    %v135 = vadd.s32 %v133, 16
    %v136 = vadd.s32 %v133, 24
    %v137 = vmul.u32 %v27, 8
    %v138 = vlaneseq
    %v139 = vshrl.u32 %v138, 7
    %v140 = vsub.s32 0, %v139
    %v141 = vrot.slane %v137, %v140
    %vm142 = vcmp.ge.s32.totalorder %v133, %v141
    %vm143 = vcmp.ge.s32.totalorder %v134, %v141
    %vm144 = vcmp.ge.s32.totalorder %v135, %v141
    %vm145 = vcmp.ge.s32.totalorder %v136, %v141
    %v146 = vadd.s32 %v137, 8
    %v147 = vlaneseq
    %v148 = vshrl.u32 %v147, 7
    %v149 = vsub.s32 0, %v148
    %v150 = vrot.slane %v146, %v149
    %vm151 = vcmp.lt.s32.totalorder %v133, %v150
    %vm152 = vcmp.lt.s32.totalorder %v134, %v150
    %vm153 = vcmp.lt.s32.totalorder %v135, %v150
    %vm154 = vcmp.lt.s32.totalorder %v136, %v150
    %vm155 = vmand %vm142, %vm151
    %vm156 = vmand %vm143, %vm152
    %vm157 = vmand %vm144, %vm153
    %vm158 = vmand %vm145, %vm154
    %v159 = vsel %vm155, %v128, 0.0
    %v160 = vsel %vm156, %v129, 0.0
    %v161 = vsel %vm157, %v130, 0.0
    %v162 = vsel %vm158, %v131, 0.0
    %v163 = vld [vmem:[%s4] sm:$0xf]
    %v164 = vld [vmem:[%s4 + $0x4] sm:$0xf]
    %v165 = vpack.c.bf16 %v160, %v159
    %v166 = vpack.c.bf16 %v162, %v161
    %v167 = vlaneseq
    %v168 = vshrl.u32 %v167, 7
    %v169 = vsub.s32 0, %v168
    %v170 = vrot.slane %v27, %v169
    %vm171 = vcmp.eq.s32.totalorder %v133, %v170
    %v172 = vsel %vm171, 1, 0
    %v173 = vcvt.s32.f32 %v172
    %v174 = vld [vmem:[%s5] sm:$0xff]
    %v175 = vld [vmem:[%s5 + $0x8] sm:$0xff]
    %vm176 = vcmask 31744
    %v178 = vsel %vm176, %v174, 0
    %v181 = vsel %vm176, %v175, 0
    %vm183 = vcmask 1043456
    %v185 = vsel %vm183, %v173, 0
    %187 = vmatprep.subr.mxu0 0.0
    %188 = vmatpush1.msra.mxu0 %v185
    %189 = vmatprep.subr.mxu0 0.0
    %190 = vmatpush1.msra.mxu0 0.0
    %191 = vmatprep.subr.mxu0 0.0
    %192 = vmatpush1.msra.mxu0 0.0
    %193 = vmatprep.subr.mxu0 0.0
    %194 = vmatpush1.msra.mxu0 0.0
    %195 = vmatprep.subr.mxu0 0.0
    %196 = vmatpush1.msra.mxu0 0.0
    %197 = vmatprep.subr.mxu0 0.0
    %198 = vmatpush1.msra.mxu0 0.0
    %199 = vmatprep.subr.mxu0 0.0
    %200 = vmatpush1.msra.mxu0 0.0
    %201 = vmatprep.subr.mxu0 0.0
    %202 = vmatpush1.msra.mxu0 0.0
    %203 = vmatprep.subr.mxu0 0.0
    %204 = vmatpush1.msra.mxu0 0.0
    %205 = vmatprep.subr.mxu0 0.0
    %206 = vmatpush1.msra.mxu0 0.0
    %207 = vmatprep.subr.mxu0 0.0
    %208 = vmatpush1.msra.mxu0 0.0
    %209 = vmatprep.subr.mxu0 0.0
    %210 = vmatpush1.msra.mxu0 0.0
    %211 = vmatprep.subr.mxu0 0.0
    %212 = vmatpush1.msra.mxu0 0.0
    %213 = vmatprep.subr.mxu0 0.0
    %214 = vmatpush1.msra.mxu0 0.0
    %215 = vmatprep.subr.mxu0 0.0
    %216 = vmatpush1.msra.mxu0 0.0
    %217 = vmatprep.subr.mxu0 0.0
    %218 = vmatpush1.msra.mxu0 0.0
    %219 = vmatprep.subr.mxu0 0.0
    %220 = vmatpush1.msra.mxu0 0.0
    %221 = vmatprep.subr.mxu0 0.0
    %222 = vmatpush1.msra.mxu0 0.0
    %223 = vmatprep.subr.mxu0 0.0
    %224 = vmatpush1.msra.mxu0 0.0
    %225 = vmatprep.subr.mxu0 0.0
    %226 = vmatpush1.msra.mxu0 0.0
    %227 = vmatprep.subr.mxu0 0.0
    %228 = vmatpush1.msra.mxu0 0.0
    %229 = vmatprep.subr.mxu0 0.0
    %230 = vmatpush1.msra.mxu0 0.0
    %231 = vmatprep.subr.mxu0 0.0
    %232 = vmatpush1.msra.mxu0 0.0
    %233 = vmatprep.subr.mxu0 0.0
    %234 = vmatpush1.msra.mxu0 0.0
    %235 = vmatprep.subr.mxu0 0.0
    %236 = vmatpush1.msra.mxu0 0.0
    %237 = vmatprep.subr.mxu0 0.0
    %238 = vmatpush1.msra.mxu0 0.0
    %239 = vmatprep.subr.mxu0 0.0
    %240 = vmatpush1.msra.mxu0 0.0
    %241 = vmatprep.subr.mxu0 0.0
    %242 = vmatpush1.msra.mxu0 0.0
    %243 = vmatprep.subr.mxu0 0.0
    %244 = vmatpush1.msra.mxu0 0.0
    %245 = vmatprep.subr.mxu0 0.0
    %246 = vmatpush1.msra.mxu0 0.0
    %247 = vmatprep.subr.mxu0 0.0
    %248 = vmatpush1.msra.mxu0 0.0
    %249 = vmatprep.subr.mxu0 0.0
    %250 = vmatpush1.msra.mxu0 0.0
    %251 = vmatprep.mubr.f32.mxu0 0.0
    %252 = vmatmul.mubr.f32.gmra.mrb[0].mxu0 %v178
    %v253 = vpop.f32.mrb[0].mxu0
    %v254 = vadd.f32 0.0, %v253
    %v255 = vpop.f32.mrb[0].mxu0
    %256 = vmatprep.mubr.f32.mxu0 0.0
    %257 = vmatmul.mubr.f32.gmra.mrb[0].mxu0 %v181
    %v258 = vpop.f32.mrb[0].mxu0
    %v259 = vadd.f32 0.0, %v258
    %v260 = vpop.f32.mrb[0].mxu0
    %261 = vdwg.mxu0
    %v264 = vunpack.c.l.b16 %v163
    %v265 = vunpack.c.l.b16 %v164
    %v266 = vpack.c.b16 %v265, %v264
    %vm267 = vcmask 261120
    %v269 = vsel %vm267, %v266, 0
    %271 = vmatprep.subr.bf16.mxu0 0
    %272 = vmatpush1.bf16.msra.mxu0 %v165
    %273 = vmatprep.subr.bf16.mxu0 0
    %274 = vmatpush1.bf16.msra.mxu0 %v166
    %275 = vmatprep.subr.bf16.mxu0 0
    %276 = vmatpush1.bf16.msra.mxu0 0
    %277 = vmatprep.subr.bf16.mxu0 0
    %278 = vmatpush1.bf16.msra.mxu0 0
    %279 = vmatprep.subr.bf16.mxu0 0
    %280 = vmatpush1.bf16.msra.mxu0 0
    %281 = vmatprep.subr.bf16.mxu0 0
    %282 = vmatpush1.bf16.msra.mxu0 0
    %283 = vmatprep.subr.bf16.mxu0 0
    %284 = vmatpush1.bf16.msra.mxu0 0
    %285 = vmatprep.subr.bf16.mxu0 0
    %286 = vmatpush1.bf16.msra.mxu0 0
    %287 = vmatprep.subr.bf16.mxu0 0
    %288 = vmatpush1.bf16.msra.mxu0 0
    %289 = vmatprep.subr.bf16.mxu0 0
    %290 = vmatpush1.bf16.msra.mxu0 0
    %291 = vmatprep.subr.bf16.mxu0 0
    %292 = vmatpush1.bf16.msra.mxu0 0
    %293 = vmatprep.subr.bf16.mxu0 0
    %294 = vmatpush1.bf16.msra.mxu0 0
    %295 = vmatprep.subr.bf16.mxu0 0
    %296 = vmatpush1.bf16.msra.mxu0 0
    %297 = vmatprep.subr.bf16.mxu0 0
    %298 = vmatpush1.bf16.msra.mxu0 0
    %299 = vmatprep.subr.bf16.mxu0 0
    %300 = vmatpush1.bf16.msra.mxu0 0
    %301 = vmatprep.subr.bf16.mxu0 0
    %302 = vmatpush1.bf16.msra.mxu0 0
    %303 = vmatprep.mubr.bf16.mxu0 0
    %304 = vmatmul.mubr.bf16.gmra.mrb[0].mxu0 %v269
    %v305 = vpop.f32.mrb[0].mxu0
    %v306 = vadd.f32 %v254, %v305
    %v307 = vpop.f32.mrb[0].mxu0
    %v308 = vpop.f32.mrb[0].mxu0
    %v309 = vadd.f32 %v259, %v308
    %v310 = vpop.f32.mrb[0].mxu0
    %311 = vdwg.mxu0
    %312 = vst [vmem:[#allocation2] sm:$0xff] %v306
    %313 = vst [vmem:[#allocation2 + $0x8] sm:$0xff] %v309
    // Predicated region
    $region26: #{tpu_custom_call.1} parent=1 // pred_check
      _
    $region27: #{tpu_custom_call.1} parent=1 // pred_check_branch
      %315 = sbr.rel (0) target = $region29
    $region28: #{tpu_custom_call.1} parent=1 // pred_region
      %s317 = ssub.s32 256, 256
      %318 = vsyncadd [#allocation3], %s317
      %s319 = sshll.u32 [#allocation2], 4
      %s320 = int_to_ptr.vmem [resolvable:$true] %s319
      %325 = dma.vmem_to_hbm [thread:$0]  %s320, 256, %s6, [#allocation3], 128, 128, 8
    $region29: #{tpu_custom_call.1} parent=1 // pred_fallthru
      _
    // Predicated region
    $region30: #{tpu_custom_call.1} parent=1 // pred_check
      _
    $region31: #{tpu_custom_call.1} parent=1 // pred_check_branch
      %327 = sbr.rel (0) target = $region33
    $region32: #{tpu_custom_call.1} parent=1 // pred_region
      %328 = dma.done [#allocation3], 256
    $region33: #{tpu_custom_call.1} parent=1 // pred_fallthru
      _
    %329 = vsyncpa [#allocation3], 1

</llo_original>
